<compile_context>
chip_gen: v7x
topology: tpu7x:2x2x1
jax: 0.10.0
libtpu: 0.0.40
codegen_flags: <defaults>
</compile_context>

<pallas_src>
import functools

import jax
import jax.numpy as jnp
from jax.experimental import pallas as pl
from jax.experimental.pallas import tpu as pltpu

_HEAD_LANES = 128  # lane-dense slab width for the fused 1x1 head output


def _round_up(x, m):
    return (x + m - 1) // m * m


@functools.lru_cache(None)
def _vmem_limit_bytes():
    """3/4 of the chip's VMEM (cap 100 MiB); 48 MiB fallback (safe on v7x)."""
    cap = None
    try:
        info_fn = getattr(pltpu, "get_tpu_info", None)
        if info_fn is not None:
            cap = int(getattr(info_fn(), "vmem_capacity_bytes", 0)) or None
    except Exception:
        cap = None
    if cap is None:
        return 48 * 1024 * 1024
    return min(cap * 3 // 4, 100 * 1024 * 1024)


def _m_tiling(r):
    """Single tile when R<=512 (grid steps are pure overhead on 1-TC chips);
    512-row tiles otherwise so the 'parallel' M axis feeds both v7x cores."""
    if r <= 512:
        return _round_up(max(r, 8), 8), 1
    tm = 512
    return tm, -(-r // tm)


# --------------------------------------------------------------------------
# Kernel 1: first conv layer (tiny Cin) as one im2col matmul + bias + LeakyReLU
#   lhs_ref : (tm, K_pad)      bf16   wrapper-built im2col rows (K padded)
#   w_ref   : (K_pad, Cout_pad) bf16  weight (rows/cols zero-padded)
#   b_ref   : (1, Cout_pad)    f32
#   out_ref : (tm, Cout_pad)   bf16   lane-dense (Cout padded to 128)
# --------------------------------------------------------------------------
def _first_conv_kernel(lhs_ref, w_ref, b_ref, out_ref, *, slope):
    y = jnp.dot(lhs_ref[...], w_ref[...], preferred_element_type=jnp.float32)
    y = y + b_ref[...]
    out_ref[...] = jnp.where(y >= 0, y, slope * y).astype(out_ref.dtype)


def first_conv_lrelu(x_nhwc, w_mat, b_row, *, slope=0.01):
    """3x3/stride-2/pad-1 conv for small Cin via wrapper im2col.
    Returns (N, H//2, W//2, Cout_pad) bf16 (extra channels are exactly zero)."""
    N, H, W, C = x_nhwc.shape
    assert H % 2 == 0 and W % 2 == 0
    Ho, Wo = H // 2, W // 2
    k_raw = 9 * C
    k_pad, cout_pad = w_mat.shape

    xb = x_nhwc.astype(jnp.bfloat16)
    xp = jnp.pad(xb, ((0, 0), (1, 1), (1, 1), (0, 0)))
    cols = [xp[:, kh:kh + 2 * Ho:2, kw:kw + 2 * Wo:2, :]
            for kh in range(3) for kw in range(3)]
    lhs = jnp.concatenate(cols, axis=-1).reshape(N * Ho * Wo, k_raw)

    R = N * Ho * Wo
    tm, n_m = _m_tiling(R)
    R_pad = tm * n_m
    lhs = jnp.pad(lhs, ((0, R_pad - R), (0, k_pad - k_raw)))

    out = pl.pallas_call(
        functools.partial(_first_conv_kernel, slope=slope),
        out_shape=jax.ShapeDtypeStruct((R_pad, cout_pad), jnp.bfloat16),
        grid_spec=pltpu.PrefetchScalarGridSpec(
            num_scalar_prefetch=0,
            grid=(n_m,),
            in_specs=[pl.BlockSpec((tm, k_pad), lambda m: (m, 0)),
                      pl.BlockSpec((k_pad, cout_pad), lambda m: (0, 0)),
                      pl.BlockSpec((1, cout_pad), lambda m: (0, 0))],
            out_specs=pl.BlockSpec((tm, cout_pad), lambda m: (m, 0)),
        ),
        compiler_params=pltpu.CompilerParams(
            dimension_semantics=("parallel",),
            vmem_limit_bytes=_vmem_limit_bytes(),
        ),
    )(lhs, w_mat, b_row)
    return out[:R].reshape(N, Ho, Wo, cout_pad)


# --------------------------------------------------------------------------
# Kernel 2: 3x3 / stride-2 conv layer (+ optional fused 1x1 head), grid=(n_m,)
#   planes_ref : (4*R_in, C)   bf16  4 parity planes of the padded input,
#                                    rows flattened over (N, Ho+1, Wo+1)
#   w_ref      : (9*C, Cout)   bf16  per-tap weights stacked along K
#   b_ref      : (1, Cout)     f32
#   [hw_ref    : (1, Cout)     f32   fused 1x1 head weight]
#   [hb_ref    : (1, 1)        f32   fused 1x1 head bias]
#   out_ref    : (tm, Cout) bf16   or (tm, _HEAD_LANES) f32 for the head layer
# --------------------------------------------------------------------------
def _parity_conv_kernel(planes_ref, w_ref, b_ref, *rest,
                        tm, wo1, r_in, slope, head):
    if head:
        hw_ref, hb_ref, out_ref = rest
    else:
        (out_ref,) = rest

    m = pl.program_id(0)
    base = pl.multiple_of(m * tm, 8)

    # Build the (tm, 9C) im2col tile from the resident parity planes: 9 shifted
    # static-size reads concatenated along lanes (C is a multiple of 128, so the
    # per-tap lane offsets are tile-aligned), then ONE big-K MXU contraction.
    taps = []
    for t in range(9):
        kh, kw = t // 3, t % 3
        dh, dw = kh // 2, kw // 2
        plane = (kh % 2) * 2 + (kw % 2)
        row0 = plane * r_in + base + dh * wo1 + dw
        taps.append(planes_ref[pl.ds(row0, tm), :])
    lhs = jnp.concatenate(taps, axis=-1)                          # (tm, 9C) bf16

    y = jnp.dot(lhs, w_ref[...], preferred_element_type=jnp.float32)
    y = y + b_ref[...]                                            # f32 epilogue
    y = jnp.where(y >= 0, y, slope * y)                           # LeakyReLU(0.01)

    if head:
        # fused final 1x1 conv: lane-reduce over the channels; write a
        # lane-dense 128-wide slab (wrapper keeps column 0).
        o = jnp.sum(y * hw_ref[...], axis=-1, keepdims=True) + hb_ref[...]
        out_ref[...] = jnp.broadcast_to(o, out_ref.shape).astype(out_ref.dtype)
    else:
        out_ref[...] = y.astype(out_ref.dtype)


def conv3x3_s2_lrelu(x_nhwc, w_taps, b_row, *, slope=0.01, head=None):
    """x_nhwc: (N, H, W, C) with H, W even and C % 128 == 0.
    w_taps: (9*C, Cout) bf16.  Returns (N, H//2, W//2, Cout) bf16, or
    (N, H//2, W//2, 1) f32 when the 1x1 head is fused."""
    N, H, W, C = x_nhwc.shape
    assert H % 2 == 0 and W % 2 == 0
    assert C % 128 == 0 and w_taps.shape[0] == 9 * C
    Cout = w_taps.shape[-1]
    Ho, Wo = H // 2, W // 2
    R = N * (Ho + 1) * (Wo + 1)       # expanded (Ho+1, Wo+1) helper grid

    tm, n_m = _m_tiling(R)
    R_pad = n_m * tm
    R_in = _round_up(R_pad + Wo + 2, 8)   # keeps every shifted tap read in-bounds

    # pad + space-to-depth into 4 parity planes (pure data movement, ~1.3x input)
    xb = x_nhwc.astype(jnp.bfloat16)
    xp = jnp.pad(xb, ((0, 0), (1, 1), (1, 1), (0, 0)))
    planes = xp.reshape(N, Ho + 1, 2, Wo + 1, 2, C)
    planes = planes.transpose(2, 4, 0, 1, 3, 5).reshape(4, R, C)
    planes = jnp.pad(planes, ((0, 0), (0, R_in - R), (0, 0)))
    planes = planes.reshape(4 * R_in, C)

    in_specs = [
        pl.BlockSpec((4 * R_in, C), lambda m: (0, 0)),     # resident planes
        pl.BlockSpec((9 * C, Cout), lambda m: (0, 0)),     # resident weights
        pl.BlockSpec((1, Cout), lambda m: (0, 0)),         # bias
    ]
    args = [planes, w_taps, b_row]
    if head is not None:
        hw, hb = head
        in_specs += [pl.BlockSpec((1, Cout), lambda m: (0, 0)),
                     pl.BlockSpec((1, 1), lambda m: (0, 0))]
        args += [hw, hb]
        out_cols, out_dtype = _HEAD_LANES, jnp.float32
    else:
        out_cols, out_dtype = Cout, jnp.bfloat16

    kernel = functools.partial(_parity_conv_kernel, tm=tm, wo1=Wo + 1,
                               r_in=R_in, slope=slope, head=head is not None)
    out = pl.pallas_call(
        kernel,
        out_shape=jax.ShapeDtypeStruct((R_pad, out_cols), out_dtype),
        grid_spec=pltpu.PrefetchScalarGridSpec(
            num_scalar_prefetch=0,
            grid=(n_m,),
            in_specs=in_specs,
            out_specs=pl.BlockSpec((tm, out_cols), lambda m: (m, 0)),
        ),
        compiler_params=pltpu.CompilerParams(
            dimension_semantics=("parallel",),
            vmem_limit_bytes=_vmem_limit_bytes(),
        ),
    )(*args)

    ncols = 1 if head is not None else Cout
    out = out[:R, :ncols].reshape(N, Ho + 1, Wo + 1, ncols)[:, :Ho, :Wo, :]
    return out


# --------------------------------------------------------------------------
# Parameter construction (deterministic, synthetic)
# --------------------------------------------------------------------------
def spectral_normalize(w, key, n_iter=1):
    """Emulate torch spectral_norm forward: w / sigma_max, one power iteration."""
    cout = w.shape[0]
    wm = w.reshape(cout, -1)
    u = jax.random.normal(key, (cout,), jnp.float32)
    u = u / (jnp.linalg.norm(u) + 1e-12)
    v = None
    for _ in range(n_iter):
        v = wm.T @ u
        v = v / (jnp.linalg.norm(v) + 1e-12)
        u = wm @ v
        u = u / (jnp.linalg.norm(u) + 1e-12)
    sigma = u @ (wm @ v)
    return w / sigma


def make_params(key, input_dim, n_layer=4, ch=64):
    """Replicates CrossDiscriminator._make_net channel schedule and precomputes
    all kernel-side layouts once: layer-1 im2col weight with K padded to x8 and
    Cout padded to 128 lanes; parity-layer (9*Cin_pad, Cout) bf16 tap stacks
    with Cin padded to x128 (zero rows, exact no-op); f32 head."""
    dims = [(input_dim, ch)]
    tch = ch
    for _ in range(1, n_layer - 1):
        dims.append((tch, tch * 2))
        tch *= 2
    dims.append((tch, tch * 2))   # last LeakyReLUConv2d
    tch *= 2
    dims.append((tch, 1))         # final 1x1 conv

    raw = []
    for i, (cin, cout) in enumerate(dims):
        k = 1 if i == len(dims) - 1 else 3
        key, kw_, kb_, ku_ = jax.random.split(key, 4)
        w = 0.02 * jax.random.normal(kw_, (cout, cin, k, k), jnp.float32)
        bound = 1.0 / float(cin * k * k) ** 0.5
        b = jax.random.uniform(kb_, (cout,), jnp.float32, -bound, bound)
        w = spectral_normalize(w, ku_)    # sn=True on every conv in the module
        raw.append((w, b))

    # layer 1: (K_pad, Cout_pad) im2col weight
    w0, b0 = raw[0]
    c0_out, c0_in = w0.shape[0], w0.shape[1]
    k_raw = 9 * c0_in
    k_pad = _round_up(k_raw, 8)
    c0_out_pad = _round_up(c0_out, 128)
    w0m = jnp.transpose(w0, (2, 3, 1, 0)).reshape(k_raw, c0_out)
    w0m = jnp.pad(w0m, ((0, k_pad - k_raw), (0, c0_out_pad - c0_out)))
    b0p = jnp.pad(b0, (0, c0_out_pad - c0_out)).reshape(1, c0_out_pad)
    first = (w0m.astype(jnp.bfloat16), b0p.astype(jnp.float32))

    # parity layers 2..n: (9*Cin_pad, Cout) tap stacks
    convs = []
    for w, b in raw[1:-1]:
        cout, cin = w.shape[0], w.shape[1]
        cin_pad = _round_up(cin, 128)
        wp = jnp.pad(w, ((0, 0), (0, cin_pad - cin), (0, 0), (0, 0)))
        w_taps = jnp.transpose(wp, (2, 3, 1, 0)).reshape(9 * cin_pad, cout)
        convs.append((w_taps.astype(jnp.bfloat16),
                      b.reshape(1, cout).astype(jnp.float32)))

    w1, b1 = raw[-1]
    head = (w1.reshape(1, -1).astype(jnp.float32),
            b1.reshape(1, 1).astype(jnp.float32))
    return {"raw": raw, "first": first, "convs": convs, "head": head}


# --------------------------------------------------------------------------
# Forward pass (matches nn.Sequential of the module)
# --------------------------------------------------------------------------
def cross_discriminator_forward(x_nchw, params):
    x = jnp.transpose(x_nchw, (0, 2, 3, 1))                 # NCHW -> NHWC
    w0, b0 = params["first"]
    x = first_conv_lrelu(x, w0, b0)                         # layer 1 (Cin small)
    convs = params["convs"]
    for w_taps, b in convs[:-1]:
        x = conv3x3_s2_lrelu(x, w_taps, b)
    w_taps, b = convs[-1]
    out = conv3x3_s2_lrelu(x, w_taps, b, head=params["head"])   # fused 1x1 head
    return jnp.transpose(out, (0, 3, 1, 2))                 # back to NCHW


# --------------------------------------------------------------------------
# Plain-JAX reference with the same numerics as the kernel pipeline:
# bf16 MXU operands / f32 accumulation for the 3x3 convs, f32 epilogues,
# bf16 intermediate activations, f32 fused 1x1 head.
# --------------------------------------------------------------------------
def reference_forward(x_nchw, raw_params):
    x = x_nchw
    n_conv = len(raw_params) - 1
    for i in range(n_conv):
        w, b = raw_params[i]
        y = jax.lax.conv_general_dilated(
            x.astype(jnp.bfloat16), w.astype(jnp.bfloat16),
            (2, 2), ((1, 1), (1, 1)),
            dimension_numbers=("NCHW", "OIHW", "NCHW"),
            preferred_element_type=jnp.float32)
        y = y + b.reshape(1, -1, 1, 1)
        y = jnp.where(y >= 0, y, 0.01 * y)
        x = y if i == n_conv - 1 else y.astype(jnp.bfloat16)
    w, b = raw_params[-1]
    y = jax.lax.conv_general_dilated(
        x, w, (1, 1), ((0, 0), (0, 0)),
        dimension_numbers=("NCHW", "OIHW", "NCHW"),
        preferred_element_type=jnp.float32)
    return y + b.reshape(1, -1, 1, 1)


# --------------------------------------------------------------------------
if __name__ == "__main__":
    key = jax.random.PRNGKey(0)
    k_in, k_par = jax.random.split(key)

    # small, module-consistent shapes: batch=2, input_dim=4, spatial=16, n_layer=4
    batch, input_dim, spatial, n_layer = 2, 4, 16, 4
    x = jax.random.normal(k_in, (batch, input_dim, spatial, spatial), jnp.float32)

    params = make_params(k_par, input_dim, n_layer=n_layer, ch=64)

    out = jax.block_until_ready(cross_discriminator_forward(x, params))
    ref = jax.block_until_ready(reference_forward(x, params["raw"]))

    assert out.shape == ref.shape, (out.shape, ref.shape)
    # both paths use bf16 MXU operands with f32 accumulation; tolerance covers
    # accumulation-order / bf16 rounding-boundary differences only.
    assert jnp.allclose(out, ref, atol=5e-3, rtol=5e-3), float(
        jnp.max(jnp.abs(out - ref)))

    print("KERNEL_OK")
</pallas_src>

<mosaic_0001>
module attributes {stable_mosaic.version = 11 : i64} {
  func.func @_first_conv_kernel(%arg0: i32, %arg1: memref<128x40xbf16, #tpu.memory_space<vmem>>, %arg2: memref<40x128xbf16, #tpu.memory_space<vmem>>, %arg3: memref<1x128xf32, #tpu.memory_space<vmem>>, %arg4: memref<128x128xbf16, #tpu.memory_space<vmem>>) attributes {dimension_semantics = [#tpu.dimension_semantics<parallel>], iteration_bounds = array<i64: 1>, scalar_prefetch = 0 : i64, scratch_operands = 0 : i64, tpu.core_type = #tpu.core_type<tc>, window_params = [{transform_indices = @transform_0, window_bounds = array<i64: 128, 40>}, {pipeline_mode = #tpu.pipeline_mode<synchronous>, transform_indices = @transform_1, window_bounds = array<i64: 40, 128>}, {pipeline_mode = #tpu.pipeline_mode<synchronous>, transform_indices = @transform_2, window_bounds = array<i64: 1, 128>}, {transform_indices = @transform_3, window_bounds = array<i64: 128, 128>}]} {
    %c0 = arith.constant 0 : index
    %c0_0 = arith.constant 0 : index
    %0 = vector.load %arg1[%c0, %c0_0] : memref<128x40xbf16, #tpu.memory_space<vmem>>, vector<128x40xbf16>
    %c0_1 = arith.constant 0 : index
    %c0_2 = arith.constant 0 : index
    %1 = vector.load %arg2[%c0_1, %c0_2] : memref<40x128xbf16, #tpu.memory_space<vmem>>, vector<40x128xbf16>
    %cst = arith.constant dense<0.000000e+00> : vector<128x128xf32>
    %2 = tpu.matmul %0, %1, %cst {dimension_numbers = #tpu.dot_dimension_numbers<[1], [0], [0], [1], [0, 0, 1, 1], [], []>} : vector<128x40xbf16>, vector<40x128xbf16>, vector<128x128xf32> -> vector<128x128xf32>
    %c0_3 = arith.constant 0 : index
    %c0_4 = arith.constant 0 : index
    %3 = vector.load %arg3[%c0_3, %c0_4] : memref<1x128xf32, #tpu.memory_space<vmem>>, vector<1x128xf32>
    %4 = vector.broadcast %3 : vector<1x128xf32> to vector<128x128xf32>
    %5 = arith.addf %2, %4 : vector<128x128xf32>
    %cst_5 = arith.constant 0.000000e+00 : f32
    %6 = vector.broadcast %cst_5 : f32 to vector<128x128xf32>
    %7 = arith.cmpf oge, %5, %6 : vector<128x128xf32>
    %cst_6 = arith.constant 0.00999999977 : f32
    %8 = vector.broadcast %cst_6 : f32 to vector<128x128xf32>
    %9 = arith.mulf %8, %5 : vector<128x128xf32>
    %10 = arith.select %7, %5, %9 : vector<128x128xi1>, vector<128x128xf32>
    %11 = arith.truncf %10 : vector<128x128xf32> to vector<128x128xbf16>
    %c0_7 = arith.constant 0 : index
    %c0_8 = arith.constant 0 : index
    %12 = vector.load %arg4[%c0_7, %c0_8] : memref<128x128xbf16, #tpu.memory_space<vmem>>, vector<128x128xbf16>
    tpu.vector_store %arg4[%c0_7, %c0_8], %11 {strides = array<i32>} : memref<128x128xbf16, #tpu.memory_space<vmem>>, vector<128x128xbf16>,
    return
  }
  func.func @transform_0(%arg0: i32) -> (i32, i32) {
    %c0_i32 = arith.constant 0 : i32
    %c0_i32_0 = arith.constant 0 : i32
    return %arg0, %c0_i32 : i32, i32
  }
  func.func @transform_1(%arg0: i32) -> (i32, i32) {
    %c0_i32 = arith.constant 0 : i32
    %c0_i32_0 = arith.constant 0 : i32
    %c0_i32_1 = arith.constant 0 : i32
    return %c0_i32, %c0_i32_0 : i32, i32
  }
  func.func @transform_2(%arg0: i32) -> (i32, i32) {
    %c0_i32 = arith.constant 0 : i32
    %c0_i32_0 = arith.constant 0 : i32
    %c0_i32_1 = arith.constant 0 : i32
    return %c0_i32, %c0_i32_0 : i32, i32
  }
  func.func @transform_3(%arg0: i32) -> (i32, i32) {
    %c0_i32 = arith.constant 0 : i32
    %c0_i32_0 = arith.constant 0 : i32
    return %arg0, %c0_i32 : i32, i32
  }
}

</mosaic_0001>

<llo_original>
// kernel: tpu_custom_call.1
$region0: #{tpu_custom_call.1}
  #allocation0 [shape = 'u32[]', space=smem, size = 0x4, offset = 0x4, fixed_abs, tag = 'smem constant byte address 0x4 - core index']
  #allocation1 [shape = 'u32[144,128]{1,0:T(1,128)}', space=vmem, size = 0x12000, scoped, tag = 'internal scratch']
  %s0 = inlined_call_operand.vmem [shape: bf16[128,40], index: 0, kind: input, shape index: {}]
  %s1 = inlined_call_operand.vmem [shape: bf16[40,128], index: 1, kind: input, shape index: {}]
  %s2 = inlined_call_operand.vmem [shape: f32[1,128], index: 2, kind: input, shape index: {}]
  %s3 = inlined_call_operand.hbm [shape: bf16[128,128], index: 3, kind: output, shape index: {}]
  %s4 = sld [smem:[#allocation0]]
  $region22: #{tpu_custom_call.1} parent=0
    _
  %s6 = ssub.s32 1, %s4
  %s7 = scalar_select 0, %s6, %s4
  $region1: #{tpu_custom_call.1} parent=0
    #allocation2 [shape = 'u8[32768]{0}', space=vmem, size = 0x8000, scoped, tag = 'output window, operand 0, single buffered']
    #allocation3 [shape = 's32[1]{0}', space=sflag, size = 0x4, scoped, tag = 'scoped memory for tpu_custom_call.1']
    %8 = vsyncpa [#allocation3], 0
    // Predicated region
    $region2: #{tpu_custom_call.1} parent=1 // pred_check
      _
    $region3: #{tpu_custom_call.1} parent=1 // pred_check_branch
      %10 = sbr.rel (0) target = $region5
    $region4: #{tpu_custom_call.1} parent=1 // pred_region
      _
    $region5: #{tpu_custom_call.1} parent=1 // pred_fallthru
      _
    // Predicated region
    $region6: #{tpu_custom_call.1} parent=1 // pred_check
      _
    $region7: #{tpu_custom_call.1} parent=1 // pred_check_branch
      %12 = sbr.rel (0) target = $region9
    $region8: #{tpu_custom_call.1} parent=1 // pred_region
      _
    $region9: #{tpu_custom_call.1} parent=1 // pred_fallthru
      _
    // Predicated region
    $region10: #{tpu_custom_call.1} parent=1 // pred_check
      _
    $region11: #{tpu_custom_call.1} parent=1 // pred_check_branch
      %14 = sbr.rel (0) target = $region13
    $region12: #{tpu_custom_call.1} parent=1 // pred_region
      _
    $region13: #{tpu_custom_call.1} parent=1 // pred_fallthru
      _
    %v16 = vld [vmem:[%s0] sm:$0xf]
    %v17 = vld [vmem:[%s0 + $0x4] sm:$0xf]
    %v18 = vld [vmem:[%s0 + $0x8] sm:$0xf]
    %v19 = vld [vmem:[%s0 + $0xc] sm:$0xf]
    %v20 = vld [vmem:[%s0 + $0x10] sm:$0xf]
    %v21 = vld [vmem:[%s0 + $0x14] sm:$0xf]
    %v22 = vld [vmem:[%s0 + $0x18] sm:$0xf]
    %v23 = vld [vmem:[%s0 + $0x1c] sm:$0xf]
    %v24 = vld [vmem:[%s0 + $0x20] sm:$0xf]
    %v25 = vld [vmem:[%s0 + $0x24] sm:$0xf]
    %v26 = vld [vmem:[%s0 + $0x28] sm:$0xf]
    %v27 = vld [vmem:[%s0 + $0x2c] sm:$0xf]
    %v28 = vld [vmem:[%s0 + $0x30] sm:$0xf]
    %v29 = vld [vmem:[%s0 + $0x34] sm:$0xf]
    %v30 = vld [vmem:[%s0 + $0x38] sm:$0xf]
    %v31 = vld [vmem:[%s0 + $0x3c] sm:$0xf]
    %v32 = vld [vmem:[%s1] sm:$0xf]
    %v33 = vld [vmem:[%s1 + $0x4] sm:$0xf]
    %v34 = vld [vmem:[%s1 + $0x8] sm:$0xf]
    %v35 = vld [vmem:[%s1 + $0xc] sm:$0xf]
    %v36 = vld [vmem:[%s1 + $0x10] sm:$0xf]
    %v37 = vld [vmem:[%s2] sm:$0x1]
    %v39 = vlaneseq
    %v40 = vshrl.u32 %v39, 7
    %v41 = vsub.s32 0, %v40
    %v42 = vrot.slane %v37, %v41
    %v60 = vunpack.c.l.b16 %v16
    %v61 = vunpack.c.l.b16 %v17
    %v62 = vunpack.c.l.b16 %v18
    %v63 = vunpack.c.l.b16 %v19
    %v64 = vunpack.c.l.b16 %v20
    %v65 = vunpack.c.l.b16 %v21
    %v66 = vunpack.c.l.b16 %v22
    %v67 = vunpack.c.l.b16 %v23
    %v68 = vunpack.c.l.b16 %v24
    %v69 = vunpack.c.l.b16 %v25
    %v70 = vunpack.c.l.b16 %v26
    %v71 = vunpack.c.l.b16 %v27
    %v72 = vunpack.c.l.b16 %v28
    %v73 = vunpack.c.l.b16 %v29
    %v74 = vunpack.c.l.b16 %v30
    %v75 = vunpack.c.l.b16 %v31
    %v76 = vpack.c.b16 %v61, %v60
    %v77 = vpack.c.b16 %v63, %v62
    %v78 = vpack.c.b16 %v65, %v64
    %v79 = vpack.c.b16 %v67, %v66
    %v80 = vpack.c.b16 %v69, %v68
    %v81 = vpack.c.b16 %v71, %v70
    %v82 = vpack.c.b16 %v73, %v72
    %v83 = vpack.c.b16 %v75, %v74
    %v89 = vunpack.c.l.b16 %v32
    %v90 = vunpack.c.l.b16 %v33
    %v91 = vunpack.c.l.b16 %v34
    %v92 = vunpack.c.l.b16 %v35
    %v93 = vunpack.c.l.b16 %v36
    %v94 = vpack.c.b16 %v90, %v89
    %v95 = vpack.c.b16 %v92, %v91
    %v96 = vpack.c.b16 %v93, %v93
    %vm99 = vcmask 326656
    %v101 = vsel %vm99, %v76, 0
    %v104 = vsel %vm99, %v77, 0
    %v107 = vsel %vm99, %v78, 0
    %v110 = vsel %vm99, %v79, 0
    %v113 = vsel %vm99, %v80, 0
    %v116 = vsel %vm99, %v81, 0
    %v119 = vsel %vm99, %v82, 0
    %v122 = vsel %vm99, %v83, 0
    %vm124 = vcmask 1043456
    %v126 = vsel %vm124, %v96, 0
    %128 = vmatprep.subr.bf16.mxu0 0
    %129 = vmatpush1.bf16.msra.mxu0 %v94
    %130 = vmatprep.subr.bf16.mxu0 0
    %131 = vmatpush1.bf16.msra.mxu0 %v95
    %132 = vmatprep.subr.bf16.mxu0 0
    %133 = vmatpush1.bf16.msra.mxu0 %v126
    %134 = vmatprep.subr.bf16.mxu0 0
    %135 = vmatpush1.bf16.msra.mxu0 0
    %136 = vmatprep.subr.bf16.mxu0 0
    %137 = vmatpush1.bf16.msra.mxu0 0
    %138 = vmatprep.subr.bf16.mxu0 0
    %139 = vmatpush1.bf16.msra.mxu0 0
    %140 = vmatprep.subr.bf16.mxu0 0
    %141 = vmatpush1.bf16.msra.mxu0 0
    %142 = vmatprep.subr.bf16.mxu0 0
    %143 = vmatpush1.bf16.msra.mxu0 0
    %144 = vmatprep.subr.bf16.mxu0 0
    %145 = vmatpush1.bf16.msra.mxu0 0
    %146 = vmatprep.subr.bf16.mxu0 0
    %147 = vmatpush1.bf16.msra.mxu0 0
    %148 = vmatprep.subr.bf16.mxu0 0
    %149 = vmatpush1.bf16.msra.mxu0 0
    %150 = vmatprep.subr.bf16.mxu0 0
    %151 = vmatpush1.bf16.msra.mxu0 0
    %152 = vmatprep.subr.bf16.mxu0 0
    %153 = vmatpush1.bf16.msra.mxu0 0
    %154 = vmatprep.subr.bf16.mxu0 0
    %155 = vmatpush1.bf16.msra.mxu0 0
    %156 = vmatprep.subr.bf16.mxu0 0
    %157 = vmatpush1.bf16.msra.mxu0 0
    %158 = vmatprep.subr.bf16.mxu0 0
    %159 = vmatpush1.bf16.msra.mxu0 0
    %160 = vmatprep.mubr.bf16.mxu0 0
    %161 = vmatmul.mubr.bf16.gmra.mrb[0].mxu0 %v101
    %v162 = vpop.f32.mrb[0].mxu0
    %v163 = vadd.f32 %v42, %v162
    %v164 = vpop.f32.mrb[0].mxu0
    %v165 = vpop.f32.mrb[0].mxu0
    %v166 = vadd.f32 %v42, %v165
    %v167 = vpop.f32.mrb[0].mxu0
    %168 = vmatprep.mubr.bf16.mxu0 0
    %169 = vmatmul.mubr.bf16.gmra.mrb[0].mxu0 %v104
    %v170 = vpop.f32.mrb[0].mxu0
    %v171 = vadd.f32 %v42, %v170
    %v172 = vpop.f32.mrb[0].mxu0
    %v173 = vpop.f32.mrb[0].mxu0
    %v174 = vadd.f32 %v42, %v173
    %v175 = vpop.f32.mrb[0].mxu0
    %176 = vmatprep.mubr.bf16.mxu0 0
    %177 = vmatmul.mubr.bf16.gmra.mrb[0].mxu0 %v107
    %v178 = vpop.f32.mrb[0].mxu0
    %v179 = vadd.f32 %v42, %v178
    %v180 = vpop.f32.mrb[0].mxu0
    %v181 = vpop.f32.mrb[0].mxu0
    %v182 = vadd.f32 %v42, %v181
    %v183 = vpop.f32.mrb[0].mxu0
    %184 = vmatprep.mubr.bf16.mxu0 0
    %185 = vmatmul.mubr.bf16.gmra.mrb[0].mxu0 %v110
    %v186 = vpop.f32.mrb[0].mxu0
    %v187 = vadd.f32 %v42, %v186
    %v188 = vpop.f32.mrb[0].mxu0
    %v189 = vpop.f32.mrb[0].mxu0
    %v190 = vadd.f32 %v42, %v189
    %v191 = vpop.f32.mrb[0].mxu0
    %192 = vmatprep.mubr.bf16.mxu0 0
    %193 = vmatmul.mubr.bf16.gmra.mrb[0].mxu0 %v113
    %v194 = vpop.f32.mrb[0].mxu0
    %v195 = vadd.f32 %v42, %v194
    %v196 = vpop.f32.mrb[0].mxu0
    %v197 = vpop.f32.mrb[0].mxu0
    %v198 = vadd.f32 %v42, %v197
    %v199 = vpop.f32.mrb[0].mxu0
    %200 = vmatprep.mubr.bf16.mxu0 0
    %201 = vmatmul.mubr.bf16.gmra.mrb[0].mxu0 %v116
    %v202 = vpop.f32.mrb[0].mxu0
    %v203 = vadd.f32 %v42, %v202
    %v204 = vpop.f32.mrb[0].mxu0
    %v205 = vpop.f32.mrb[0].mxu0
    %v206 = vadd.f32 %v42, %v205
    %v207 = vpop.f32.mrb[0].mxu0
    %208 = vmatprep.mubr.bf16.mxu0 0
    %209 = vmatmul.mubr.bf16.gmra.mrb[0].mxu0 %v119
    %v210 = vpop.f32.mrb[0].mxu0
    %v211 = vadd.f32 %v42, %v210
    %v212 = vpop.f32.mrb[0].mxu0
    %v213 = vpop.f32.mrb[0].mxu0
    %v214 = vadd.f32 %v42, %v213
    %v215 = vpop.f32.mrb[0].mxu0
    %216 = vmatprep.mubr.bf16.mxu0 0
    %217 = vmatmul.mubr.bf16.gmra.mrb[0].mxu0 %v122
    %v218 = vpop.f32.mrb[0].mxu0
    %v219 = vadd.f32 %v42, %v218
    %v220 = vpop.f32.mrb[0].mxu0
    %v221 = vpop.f32.mrb[0].mxu0
    %v222 = vadd.f32 %v42, %v221
    %v223 = vpop.f32.mrb[0].mxu0
    %224 = vdwg.mxu0
    %vm225 = vcmp.ge.f32.partialorder %v163, 0.0
    %vm226 = vcmp.ge.f32.partialorder %v166, 0.0
    %vm227 = vcmp.ge.f32.partialorder %v171, 0.0
    %vm228 = vcmp.ge.f32.partialorder %v174, 0.0
    %vm229 = vcmp.ge.f32.partialorder %v179, 0.0
    %vm230 = vcmp.ge.f32.partialorder %v182, 0.0
    %vm231 = vcmp.ge.f32.partialorder %v187, 0.0
    %vm232 = vcmp.ge.f32.partialorder %v190, 0.0
    %vm233 = vcmp.ge.f32.partialorder %v195, 0.0
    %vm234 = vcmp.ge.f32.partialorder %v198, 0.0
    %vm235 = vcmp.ge.f32.partialorder %v203, 0.0
    %vm236 = vcmp.ge.f32.partialorder %v206, 0.0
    %vm237 = vcmp.ge.f32.partialorder %v211, 0.0
    %vm238 = vcmp.ge.f32.partialorder %v214, 0.0
    %vm239 = vcmp.ge.f32.partialorder %v219, 0.0
    %vm240 = vcmp.ge.f32.partialorder %v222, 0.0
    %v241 = vmul.f32 %v163, 0.01
    %v242 = vmul.f32 %v166, 0.01
    %v243 = vmul.f32 %v171, 0.01
    %v244 = vmul.f32 %v174, 0.01
    %v245 = vmul.f32 %v179, 0.01
    %v246 = vmul.f32 %v182, 0.01
    %v247 = vmul.f32 %v187, 0.01
    %v248 = vmul.f32 %v190, 0.01
    %v249 = vmul.f32 %v195, 0.01
    %v250 = vmul.f32 %v198, 0.01
    %v251 = vmul.f32 %v203, 0.01
    %v252 = vmul.f32 %v206, 0.01
    %v253 = vmul.f32 %v211, 0.01
    %v254 = vmul.f32 %v214, 0.01
    %v255 = vmul.f32 %v219, 0.01
    %v256 = vmul.f32 %v222, 0.01
    %v257 = vsel %vm225, %v163, %v241
    %v258 = vsel %vm226, %v166, %v242
    %v259 = vsel %vm227, %v171, %v243
    %v260 = vsel %vm228, %v174, %v244
    %v261 = vsel %vm229, %v179, %v245
    %v262 = vsel %vm230, %v182, %v246
    %v263 = vsel %vm231, %v187, %v247
    %v264 = vsel %vm232, %v190, %v248
    %v265 = vsel %vm233, %v195, %v249
    %v266 = vsel %vm234, %v198, %v250
    %v267 = vsel %vm235, %v203, %v251
    %v268 = vsel %vm236, %v206, %v252
    %v269 = vsel %vm237, %v211, %v253
    %v270 = vsel %vm238, %v214, %v254
    %v271 = vsel %vm239, %v219, %v255
    %v272 = vsel %vm240, %v222, %v256
    %v273 = vpack.c.bf16 %v258, %v257
    %v274 = vpack.c.bf16 %v260, %v259
    %v275 = vpack.c.bf16 %v262, %v261
    %v276 = vpack.c.bf16 %v264, %v263
    %v277 = vpack.c.bf16 %v266, %v265
    %v278 = vpack.c.bf16 %v268, %v267
    %v279 = vpack.c.bf16 %v270, %v269
    %v280 = vpack.c.bf16 %v272, %v271
    %v289 = vunpack.c.l.b16 %v273
    %v290 = vunpack.c.h.b16 %v273
    %v291 = vunpack.c.l.b16 %v274
    %v292 = vunpack.c.h.b16 %v274
    %v293 = vunpack.c.l.b16 %v275
    %v294 = vunpack.c.h.b16 %v275
    %v295 = vunpack.c.l.b16 %v276
    %v296 = vunpack.c.h.b16 %v276
    %v297 = vunpack.c.l.b16 %v277
    %v298 = vunpack.c.h.b16 %v277
    %v299 = vunpack.c.l.b16 %v278
    %v300 = vunpack.c.h.b16 %v278
    %v301 = vunpack.c.l.b16 %v279
    %v302 = vunpack.c.h.b16 %v279
    %v303 = vunpack.c.l.b16 %v280
    %v304 = vunpack.c.h.b16 %v280
    %v305 = vpack.c.b16 %v289, %v289
    %v306 = vpack.c.b16 %v290, %v290
    %v307 = vpack.c.b16 %v291, %v291
    %v308 = vpack.c.b16 %v292, %v292
    %v309 = vpack.c.b16 %v293, %v293
    %v310 = vpack.c.b16 %v294, %v294
    %v311 = vpack.c.b16 %v295, %v295
    %v312 = vpack.c.b16 %v296, %v296
    %v313 = vpack.c.b16 %v297, %v297
    %v314 = vpack.c.b16 %v298, %v298
    %v315 = vpack.c.b16 %v299, %v299
    %v316 = vpack.c.b16 %v300, %v300
    %v317 = vpack.c.b16 %v301, %v301
    %v318 = vpack.c.b16 %v302, %v302
    %v319 = vpack.c.b16 %v303, %v303
    %v320 = vpack.c.b16 %v304, %v304
    %337 = vst [vmem:[#allocation2] sm:$0xf] %v305
    %338 = vst [vmem:[#allocation2 + $0x4] sm:$0xf] %v306
    %339 = vst [vmem:[#allocation2 + $0x8] sm:$0xf] %v307
    %340 = vst [vmem:[#allocation2 + $0xc] sm:$0xf] %v308
    %341 = vst [vmem:[#allocation2 + $0x10] sm:$0xf] %v309
    %342 = vst [vmem:[#allocation2 + $0x14] sm:$0xf] %v310
    %343 = vst [vmem:[#allocation2 + $0x18] sm:$0xf] %v311
    %344 = vst [vmem:[#allocation2 + $0x1c] sm:$0xf] %v312
    %345 = vst [vmem:[#allocation2 + $0x20] sm:$0xf] %v313
    %346 = vst [vmem:[#allocation2 + $0x24] sm:$0xf] %v314
    %347 = vst [vmem:[#allocation2 + $0x28] sm:$0xf] %v315
    %348 = vst [vmem:[#allocation2 + $0x2c] sm:$0xf] %v316
    %349 = vst [vmem:[#allocation2 + $0x30] sm:$0xf] %v317
    %350 = vst [vmem:[#allocation2 + $0x34] sm:$0xf] %v318
    %351 = vst [vmem:[#allocation2 + $0x38] sm:$0xf] %v319
    %352 = vst [vmem:[#allocation2 + $0x3c] sm:$0xf] %v320
    // Predicated region
    $region14: #{tpu_custom_call.1} parent=1 // pred_check
      _
    $region15: #{tpu_custom_call.1} parent=1 // pred_check_branch
      %354 = sbr.rel (0) target = $region17
    $region16: #{tpu_custom_call.1} parent=1 // pred_region
      %s356 = ssub.s32 1024, 1024
      %357 = vsyncadd [#allocation3], %s356
      %s358 = sshll.u32 [#allocation2], 4
      %s359 = int_to_ptr.vmem [resolvable:$true] %s358
      %364 = dma.vmem_to_hbm [thread:$0]  %s359, 1024, %s3, [#allocation3], 64, 64, 4
    $region17: #{tpu_custom_call.1} parent=1 // pred_fallthru
      _
    // Predicated region
    $region18: #{tpu_custom_call.1} parent=1 // pred_check
      _
    $region19: #{tpu_custom_call.1} parent=1 // pred_check_branch
      %366 = sbr.rel (0) target = $region21
    $region20: #{tpu_custom_call.1} parent=1 // pred_region
      %367 = dma.done [#allocation3], 1024
    $region21: #{tpu_custom_call.1} parent=1 // pred_fallthru
      _
    %368 = vsyncpa [#allocation3], 1

</llo_original>
